<compile_context>
chip_gen: v6e
topology: v6e:2x2x1
jax: 0.10.0
libtpu: 0.0.40
codegen_flags: <defaults>
</compile_context>

<pallas_src>
import functools
import math

import jax
import jax.numpy as jnp
from jax import lax
from jax.experimental import pallas as pl
from jax.experimental.pallas import tpu as pltpu


def _choose_time_tile(src_len, batch, row_cap):
    """Pick a time tile ts so that ts*batch % 8 == 0 (sublane-legal 2-D output
    block) and roughly `row_cap` gathered rows per grid step."""
    step = 8 // math.gcd(batch, 8)           # smallest ts with ts*batch % 8 == 0
    ts = min(src_len, max(1, row_cap // max(batch, 1)))
    ts = ((ts + step - 1) // step) * step    # round up to the legal granule
    padded_len = ((src_len + ts - 1) // ts) * ts
    return ts, padded_len


def _mean_encoder_kernel(idx_ref, table_ref, mem_ref, mean_ref,
                         emb_buf, acc_ref, sem,
                         *, src_len, ts, batch, inv_len, has_pad):
    # grid = (time_tiles,) -- the reduction ("arbitrary") axis for the mean.
    t = pl.program_id(0)
    n_t = pl.num_programs(0)
    rows = ts * batch
    base = t * rows

    # ---- Gather: one row DMA per token, HBM table -> VMEM slab. -------------
    def issue(r, carry):
        token = idx_ref[base + r]                       # scalar read from SMEM
        pltpu.make_async_copy(table_ref.at[token], emb_buf.at[r], sem).start()
        return carry

    lax.fori_loop(0, rows, issue, 0)

    def drain(r, carry):
        # All copies have identical shape, so waiting with any same-shaped
        # descriptor drains one completion from the shared semaphore.
        pltpu.make_async_copy(table_ref.at[0], emb_buf.at[0], sem).wait()
        return carry

    lax.fori_loop(0, rows, drain, 0)

    # ---- Dense slab writeback of this memory-bank tile. ---------------------
    mem_ref[...] = emb_buf[...]

    # ---- Masked running time-sum for the mean (f32 accumulator). ------------
    @pl.when(t == 0)
    def _():
        acc_ref[...] = jnp.zeros_like(acc_ref)

    if has_pad:
        tvalid = (lax.broadcasted_iota(jnp.int32, (ts, 1), 0) + t * ts) < src_len

    # Static (unrolled) loop over batch; rows for batch b sit at a fixed
    # sublane stride in the time-major slab.  For very large batch a
    # lax.fori_loop with a dynamic strided slice would be preferable.
    for b in range(batch):
        rows_b = emb_buf[pl.ds(b, ts, stride=batch), :].astype(jnp.float32)
        if has_pad:
            rows_b = jnp.where(tvalid, rows_b, 0.0)
        acc_ref[pl.ds(b, 1), :] += jnp.sum(rows_b, axis=0, keepdims=True)

    @pl.when(t == n_t - 1)
    def _():
        mean_ref[...] = (acc_ref[...] * inv_len).astype(mean_ref.dtype)


def mean_encoder_forward(src, embedding_table, num_layers):
    """src: int [src_len, batch, 1] token ids; embedding_table: [vocab, emb_dim]."""
    src_len, batch, _ = src.shape
    vocab, emb_dim = embedding_table.shape
    out_dtype = embedding_table.dtype
    itemsize = jnp.dtype(out_dtype).itemsize

    # Generation-aware VMEM budget (v7x: 64 MiB per TC; v5e/v6e: 128 MiB).
    try:
        vmem_cap = int(pltpu.get_tpu_info().vmem_capacity_bytes)
    except Exception:
        vmem_cap = 64 * 2**20                 # conservative (v7x per-TC)

    row_cap = 1024 if vmem_cap >= 100 * 2**20 else 512
    ts, padded_len = _choose_time_tile(src_len, batch, row_cap)
    rows = ts * batch
    grid_t = padded_len // ts
    has_pad = padded_len != src_len

    # Flattened, time-major token ids (no transpose round-trip), clamped into
    # the table range (torch nn.Embedding raises on OOB ids; we clamp instead
    # so a stray id cannot trigger an out-of-bounds gather DMA).
    idx = jnp.clip(src[:, :, 0].astype(jnp.int32), 0, vocab - 1)
    if has_pad:
        idx = jnp.pad(idx, ((0, padded_len - src_len), (0, 0)))
    idx_flat = idx.reshape(padded_len * batch)

    kernel = functools.partial(
        _mean_encoder_kernel,
        src_len=src_len, ts=ts, batch=batch,
        inv_len=1.0 / float(src_len), has_pad=has_pad)

    # VMEM estimate: gather slab + double-buffered output blocks + accumulator
    # (the table stays in HBM and contributes nothing).
    est = (rows * emb_dim * itemsize            # emb_buf scratch slab
           + 2 * rows * emb_dim * itemsize      # memory_bank block (double-buffered)
           + 2 * batch * emb_dim * itemsize     # mean block
           + batch * emb_dim * 4)               # f32 accumulator
    vmem_limit = int(min(int(0.7 * vmem_cap), max(32 * 2**20, 4 * est)))

    mem_flat, mean = pl.pallas_call(
        kernel,
        out_shape=(
            jax.ShapeDtypeStruct((padded_len * batch, emb_dim), out_dtype),
            jax.ShapeDtypeStruct((batch, emb_dim), out_dtype),
        ),
        grid_spec=pltpu.PrefetchScalarGridSpec(
            num_scalar_prefetch=1,                       # idx_flat -> SMEM
            grid=(grid_t,),
            in_specs=[
                pl.BlockSpec(memory_space=pl.ANY),       # table stays in HBM
            ],
            out_specs=[
                pl.BlockSpec((rows, emb_dim), lambda t, idx: (t, 0)),
                pl.BlockSpec((batch, emb_dim), lambda t, idx: (0, 0)),
            ],
            scratch_shapes=[
                pltpu.VMEM((rows, emb_dim), out_dtype),  # gather slab
                pltpu.VMEM((batch, emb_dim), jnp.float32),
                pltpu.SemaphoreType.DMA,
            ],
        ),
        compiler_params=pltpu.CompilerParams(
            dimension_semantics=("arbitrary",),
            vmem_limit_bytes=vmem_limit,
        ),
    )(idx_flat, embedding_table)

    # Free reshape (same contiguous layout); the slice only copies when padded.
    memory_bank = mem_flat.reshape(padded_len, batch, emb_dim)
    if has_pad:
        memory_bank = memory_bank[:src_len]

    # num_layers expansion of the mean is a pure broadcast — JAX glue.
    mean_expanded = jnp.broadcast_to(mean[None, :, :], (num_layers, batch, emb_dim))
    encoder_final = (mean_expanded, mean_expanded)
    return encoder_final, memory_bank


if __name__ == "__main__":
    # Small deterministic shapes consistent with the module's forward.
    src_len, batch, nfeat = 8, 2, 1
    vocab, emb_dim = 64, 32
    num_layers = 2

    key = jax.random.PRNGKey(0)
    k_emb, k_src = jax.random.split(key)

    embedding_table = jax.random.normal(k_emb, (vocab, emb_dim), dtype=jnp.float32)
    src = jax.random.randint(k_src, (src_len, batch, nfeat), 0, vocab, dtype=jnp.int32)

    (h, c), memory_bank = mean_encoder_forward(src, embedding_table, num_layers)
    jax.block_until_ready(memory_bank)
    jax.block_until_ready(h)

    # Pure-JAX reference check of the forward semantics.
    emb_ref = embedding_table[src[:, :, 0]]                  # [src_len, batch, emb_dim]
    mean_ref = jnp.mean(emb_ref, axis=0)                     # [batch, emb_dim]
    mean_ref_exp = jnp.broadcast_to(mean_ref[None], (num_layers, batch, emb_dim))

    assert memory_bank.shape == (src_len, batch, emb_dim)
    assert h.shape == (num_layers, batch, emb_dim) and c.shape == h.shape
    assert jnp.allclose(memory_bank, emb_ref, atol=1e-5)
    assert jnp.allclose(h, mean_ref_exp, atol=1e-5)
    assert jnp.allclose(c, mean_ref_exp, atol=1e-5)

    print("KERNEL_OK")
</pallas_src>

<mosaic_0001>
module attributes {stable_mosaic.version = 11 : i64} {
  func.func @_mean_encoder_kernel(%arg0: i32, %arg1: memref<16xi32, #tpu.memory_space<smem>>, %arg2: memref<64x32xf32, #tpu.memory_space<any>>, %arg3: memref<16x32xf32, #tpu.memory_space<vmem>>, %arg4: memref<2x32xf32, #tpu.memory_space<vmem>>, %arg5: memref<16x32xf32, #tpu.memory_space<vmem>>, %arg6: memref<2x32xf32, #tpu.memory_space<vmem>>, %arg7: memref<!tpu.dma_semaphore, #tpu.memory_space<semaphore_mem>>) attributes {dimension_semantics = [#tpu.dimension_semantics<arbitrary>], iteration_bounds = array<i64: 1>, scalar_prefetch = 1 : i64, scratch_operands = 3 : i64, tpu.core_type = #tpu.core_type<tc>, window_params = [{}, {transform_indices = @transform_1, window_bounds = array<i64: 16, 32>}, {pipeline_mode = #tpu.pipeline_mode<synchronous>, transform_indices = @transform_2, window_bounds = array<i64: 2, 32>}]} {
    %c16_i32 = arith.constant 16 : i32
    %0 = arith.muli %arg0, %c16_i32 : i32
    %c0_i32 = arith.constant 0 : i32
    %c16_i32_0 = arith.constant 16 : i32
    %1 = arith.addi %c0_i32, %c16_i32_0 : i32
    %c1_i32 = arith.constant 1 : i32
    scf.for %arg8 = %c0_i32 to %1 step %c1_i32  : i32 {
      %23 = arith.addi %0, %arg8 : i32
      %24 = arith.index_cast %23 : i32 to index
      %25 = memref.load %arg1[%24] : memref<16xi32, #tpu.memory_space<smem>>
      %c0_i32_24 = arith.constant 0 : i32
      %26 = tpu.memref_slice %arg2[%25, %c0_i32_24] : memref<64x32xf32, #tpu.memory_space<any>> -> memref<1x32xf32, #tpu.memory_space<any>>
      %27 = tpu.memref_squeeze %26 : memref<1x32xf32, #tpu.memory_space<any>> -> memref<32xf32, #tpu.memory_space<any>>
      %c0_i32_25 = arith.constant 0 : i32
      %28 = tpu.memref_slice %arg5[%arg8, %c0_i32_25] : memref<16x32xf32, #tpu.memory_space<vmem>> -> memref<1x32xf32, #tpu.memory_space<vmem>>
      %29 = tpu.memref_squeeze %28 : memref<1x32xf32, #tpu.memory_space<vmem>> -> memref<32xf32, #tpu.memory_space<vmem>>
      tpu.enqueue_dma source(%27 : memref<32xf32, #tpu.memory_space<any>>) target(%29 : memref<32xf32, #tpu.memory_space<vmem>>) target_semaphore(%arg7 : memref<!tpu.dma_semaphore, #tpu.memory_space<semaphore_mem>>)
    }
    %c16_i32_1 = arith.constant 16 : i32
    %c0_i32_2 = arith.constant 0 : i32
    %c16_i32_3 = arith.constant 16 : i32
    %2 = arith.addi %c0_i32_2, %c16_i32_3 : i32
    %c1_i32_4 = arith.constant 1 : i32
    scf.for %arg8 = %c0_i32_2 to %2 step %c1_i32_4  : i32 {
      %c0_i32_24 = arith.constant 0 : i32
      %c0_i32_25 = arith.constant 0 : i32
      %c0_i32_26 = arith.constant 0 : i32
      %23 = tpu.memref_slice %arg2[%c0_i32_24, %c0_i32_26] : memref<64x32xf32, #tpu.memory_space<any>> -> memref<1x32xf32, #tpu.memory_space<any>>
      %24 = tpu.memref_squeeze %23 : memref<1x32xf32, #tpu.memory_space<any>> -> memref<32xf32, #tpu.memory_space<any>>
      %c0_i32_27 = arith.constant 0 : i32
      %25 = tpu.memref_slice %arg5[%c0_i32_25, %c0_i32_27] : memref<16x32xf32, #tpu.memory_space<vmem>> -> memref<1x32xf32, #tpu.memory_space<vmem>>
      %26 = tpu.memref_squeeze %25 : memref<1x32xf32, #tpu.memory_space<vmem>> -> memref<32xf32, #tpu.memory_space<vmem>>
      tpu.wait_dma2 semaphore(%arg7 : memref<!tpu.dma_semaphore, #tpu.memory_space<semaphore_mem>>) src(%24 : memref<32xf32, #tpu.memory_space<any>>) dst(%26 : memref<32xf32, #tpu.memory_space<vmem>>)
    }
    %c0 = arith.constant 0 : index
    %c0_5 = arith.constant 0 : index
    %3 = vector.load %arg5[%c0, %c0_5] : memref<16x32xf32, #tpu.memory_space<vmem>>, vector<16x32xf32>
    %c0_6 = arith.constant 0 : index
    %c0_7 = arith.constant 0 : index
    %4 = vector.load %arg3[%c0_6, %c0_7] : memref<16x32xf32, #tpu.memory_space<vmem>>, vector<16x32xf32>
    tpu.vector_store %arg3[%c0_6, %c0_7], %3 {strides = array<i32>} : memref<16x32xf32, #tpu.memory_space<vmem>>, vector<16x32xf32>,
    %c0_i32_8 = arith.constant 0 : i32
    %5 = arith.cmpi eq, %arg0, %c0_i32_8 : i32
    %6 = arith.extui %5 : i1 to i32
    %c0_i32_9 = arith.constant 0 : i32
    %7 = arith.cmpi ne, %6, %c0_i32_9 : i32
    scf.if %7 {
      %cst_24 = arith.constant 0.000000e+00 : f32
      %23 = vector.broadcast %cst_24 : f32 to vector<2x32xf32>
      %c0_25 = arith.constant 0 : index
      %c0_26 = arith.constant 0 : index
      %24 = vector.load %arg6[%c0_25, %c0_26] : memref<2x32xf32, #tpu.memory_space<vmem>>, vector<2x32xf32>
      tpu.vector_store %arg6[%c0_25, %c0_26], %23 {strides = array<i32>} : memref<2x32xf32, #tpu.memory_space<vmem>>, vector<2x32xf32>,
    } else {
    }
    %c0_10 = arith.constant 0 : index
    %c0_11 = arith.constant 0 : index
    %8 = tpu.strided_load %arg5[%c0_10, %c0_11] {strides = array<i32: 2, 1>} : memref<16x32xf32, #tpu.memory_space<vmem>>, vector<8x32xf32>
    %c0_12 = arith.constant 0 : index
    %c0_13 = arith.constant 0 : index
    %9 = vector.load %arg6[%c0_12, %c0_13] : memref<2x32xf32, #tpu.memory_space<vmem>>, vector<1x32xf32>
    %cst = arith.constant dense<0.000000e+00> : vector<32xf32>
    %10 = vector.multi_reduction <add>, %8, %cst [0] : vector<8x32xf32> to vector<32xf32>
    %11 = vector.shape_cast %10 : vector<32xf32> to vector<1x32xf32>
    %12 = arith.addf %9, %11 : vector<1x32xf32>
    %c0_14 = arith.constant 0 : index
    %c0_15 = arith.constant 0 : index
    %13 = vector.load %arg6[%c0_14, %c0_15] : memref<2x32xf32, #tpu.memory_space<vmem>>, vector<1x32xf32>
    tpu.vector_store %arg6[%c0_14, %c0_15], %12 {strides = array<i32>} : memref<2x32xf32, #tpu.memory_space<vmem>>, vector<1x32xf32>,
    %c1 = arith.constant 1 : index
    %c0_16 = arith.constant 0 : index
    %14 = tpu.strided_load %arg5[%c1, %c0_16] {strides = array<i32: 2, 1>} : memref<16x32xf32, #tpu.memory_space<vmem>>, vector<8x32xf32>
    %c1_17 = arith.constant 1 : index
    %c0_18 = arith.constant 0 : index
    %15 = vector.load %arg6[%c1_17, %c0_18] : memref<2x32xf32, #tpu.memory_space<vmem>>, vector<1x32xf32>
    %cst_19 = arith.constant dense<0.000000e+00> : vector<32xf32>
    %16 = vector.multi_reduction <add>, %14, %cst_19 [0] : vector<8x32xf32> to vector<32xf32>
    %17 = vector.shape_cast %16 : vector<32xf32> to vector<1x32xf32>
    %18 = arith.addf %15, %17 : vector<1x32xf32>
    %c1_20 = arith.constant 1 : index
    %c0_21 = arith.constant 0 : index
    %19 = vector.load %arg6[%c1_20, %c0_21] : memref<2x32xf32, #tpu.memory_space<vmem>>, vector<1x32xf32>
    tpu.vector_store %arg6[%c1_20, %c0_21], %18 {strides = array<i32>} : memref<2x32xf32, #tpu.memory_space<vmem>>, vector<1x32xf32>,
    %c0_i32_22 = arith.constant 0 : i32
    %20 = arith.cmpi eq, %arg0, %c0_i32_22 : i32
    %21 = arith.extui %20 : i1 to i32
    %c0_i32_23 = arith.constant 0 : i32
    %22 = arith.cmpi ne, %21, %c0_i32_23 : i32
    scf.if %22 {
      %c0_24 = arith.constant 0 : index
      %c0_25 = arith.constant 0 : index
      %23 = vector.load %arg6[%c0_24, %c0_25] : memref<2x32xf32, #tpu.memory_space<vmem>>, vector<2x32xf32>
      %cst_26 = arith.constant 1.250000e-01 : f32
      %24 = vector.broadcast %cst_26 : f32 to vector<2x32xf32>
      %25 = arith.mulf %23, %24 : vector<2x32xf32>
      %c0_27 = arith.constant 0 : index
      %c0_28 = arith.constant 0 : index
      %26 = vector.load %arg4[%c0_27, %c0_28] : memref<2x32xf32, #tpu.memory_space<vmem>>, vector<2x32xf32>
      tpu.vector_store %arg4[%c0_27, %c0_28], %25 {strides = array<i32>} : memref<2x32xf32, #tpu.memory_space<vmem>>, vector<2x32xf32>,
    } else {
    }
    return
  }
  func.func @transform_1(%arg0: i32, %arg1: memref<16xi32, #tpu.memory_space<smem>>) -> (i32, i32) {
    %c0_i32 = arith.constant 0 : i32
    %c0_i32_0 = arith.constant 0 : i32
    return %arg0, %c0_i32 : i32, i32
  }
  func.func @transform_2(%arg0: i32, %arg1: memref<16xi32, #tpu.memory_space<smem>>) -> (i32, i32) {
    %c0_i32 = arith.constant 0 : i32
    %c0_i32_0 = arith.constant 0 : i32
    %c0_i32_1 = arith.constant 0 : i32
    return %c0_i32, %c0_i32_0 : i32, i32
  }
}

</mosaic_0001>

<llo_original>
// kernel: tpu_custom_call.1
$region0: #{tpu_custom_call.1}
  #allocation0 [shape = 'u32[]', space=smem, size = 0x4, offset = 0x4, fixed_abs, tag = 'smem constant byte address 0x4 - core index']
  #allocation1 [shape = 'u32[144,128]{1,0:T(1,128)}', space=vmem, size = 0x12000, scoped, tag = 'internal scratch']
  #allocation2 [shape = 'f32[16,32]{1,0:T(8,128)}', space=vmem, size = 0x2000, scoped, tag = 'scratch operand']
  #allocation3 [shape = 'f32[2,32]{1,0:T(2,128)}', space=vmem, size = 0x400, scoped, tag = 'scratch operand']
  #allocation4 [shape = 's32[1]{0}', space=sflag, size = 0x4, scoped, tag = 'scratch operand']
  #allocation5 [shape = 's32[1]{0}', space=sflag, size = 0x4, scoped, tag = 'scoped memory for tpu_custom_call.1']
  #allocation6 [shape = 'u8[512]{0}', space=smem, size = 0x200, scoped, tag = 'prefetched SMEM operand 0']
  #allocation11 [shape = 's32[]', space=sflag, size = 0x4, offset = 0, fixed_abs, tag = 'sflag constant byte address 0x0 - dummy sync flag']
  %s0 = inlined_call_operand.vmem [shape: s32[16], index: 0, kind: input, shape index: {}]
  %s1 = inlined_call_operand.vmem [shape: f32[64,32], index: 1, kind: input, shape index: {}]
  %s2 = inlined_call_operand.hbm [shape: f32[16,32], index: 2, kind: output, shape index: {0}]
  %s3 = inlined_call_operand.hbm [shape: f32[2,32], index: 3, kind: output, shape index: {1}]
  %4 = xla_tuple %s2, %s3
  %s5 = sld [smem:[#allocation0]]
  $region70: #{tpu_custom_call.1} parent=0
    _
  %s7 = ssub.s32 1, %s5
  %s8 = scalar_select 0, %s7, %s5
  %s9 = sshll.u32 %s0, 4
  %s10 = int_to_ptr.vmem [resolvable:$true] %s9
  %12 = dma.vmem_to_smem %s10, 16, [#allocation6], [#allocation5]
  %13 = dma.done [#allocation5], 16
  %14 = sfence
  $region1: #{tpu_custom_call.1} parent=0
    #allocation7 [shape = 'u8[8192]{0}', space=vmem, size = 0x2000, scoped, tag = 'output window, operand 0, single buffered']
    #allocation8 [shape = 's32[1]{0}', space=sflag, size = 0x4, scoped, tag = 'scoped memory for tpu_custom_call.1']
    #allocation9 [shape = 'u8[1024]{0}', space=vmem, size = 0x400, scoped, tag = 'output window, operand 1, single buffered']
    #allocation10 [shape = 's32[1]{0}', space=sflag, size = 0x4, scoped, tag = 'scoped memory for tpu_custom_call.1']
    %15 = vsyncpa [#allocation8], 0
    %16 = vsyncpa [#allocation10], 0
    %s17 = smul.u32 0, 16
    loop: start=0, step=1, limit=16
    $region2: #{tpu_custom_call.1} parent=1 // loop_pre_header
      _
    $region3: #{tpu_custom_call.1} parent=1 // loop_header
      %s19 = sphi 0, %s23
      %p20 = scmp.ge.s32.totalorder %s19, 16
    $region4: #{tpu_custom_call.1} parent=1 // loop_header_branch
      %22 = sbr.rel (%p20) target = $region8
    $region5: #{tpu_custom_call.1} parent=1 // loop_body
      %s24 = sadd.s32 %s17, %s19
      %s25 = sld [smem:[#allocation6 + %s24]]
      %s26 = scalar_lea.vmem %s1, %s25
      %s27 = scalar_lea.vmem [#allocation2], %s19
      %p29 = scmp.lt.u32.totalorder 1, 8
      %p30 = pneg %p29
      // Predicated region
      $region9: #{tpu_custom_call.1} parent=5 // pred_check
        _
      $region10: #{tpu_custom_call.1} parent=5 // pred_check_branch
        %32 = sbr.rel (%p29) target = $region12
      $region11: #{tpu_custom_call.1} parent=5 // pred_region
        %s48 = sand.u32 1, 7
        %p49 = scmp.eq.s32.totalorder %s48, 0
        %p50 = pneg %p49
        // Predicated region
        $region24: #{tpu_custom_call.1} parent=11 // pred_check
          _
        $region25: #{tpu_custom_call.1} parent=11 // pred_check_branch
          %52 = sbr.rel (%p49) target = $region27
        $region26: #{tpu_custom_call.1} parent=11 // pred_region
          %s53 = sand.u32 1, 7
          %s54 = ssub.s32 1, %s53
          %s55 = scalar_lea.vmem %s26, %s54
          %s56 = ssub.s32 1, %s53
          %s57 = scalar_lea.vmem %s27, %s56 [#allocation2]
          %s58 = sshll.u32 1, %s53
          %s59 = ssub.s32 %s58, 1
          loop: start=0, step=1, limit=1
          $region28: #{tpu_custom_call.1} parent=26 // loop_pre_header
            _
          $region29: #{tpu_custom_call.1} parent=26 // loop_header
            %s61 = sphi 0, %s65
            %p62 = scmp.ge.s32.totalorder %s61, 1
            %s66 = sphi %s55, %s55
            %s67 = sphi %s57, %s57
          $region30: #{tpu_custom_call.1} parent=26 // loop_header_branch
            %64 = sbr.rel (%p62) target = $region34
          $region31: #{tpu_custom_call.1} parent=26 // loop_body
            %v68 = vld [vmem:[%s66] sm:%s59]
            %69 = vst [vmem:[%s67] sm:%s59] %v68
          $region32: #{tpu_custom_call.1} parent=26 // loop_footer
            %s65 = sadd.s32 1, %s61
          $region33: #{tpu_custom_call.1} parent=26 // loop_footer_branch
            %60 = sbr.rel target = $region29
          $region34: #{tpu_custom_call.1} parent=26 // loop_exit
            _
        $region27: #{tpu_custom_call.1} parent=11 // pred_fallthru
          _
      $region12: #{tpu_custom_call.1} parent=5 // pred_fallthru
        _
      // Predicated region
      $region13: #{tpu_custom_call.1} parent=5 // pred_check
        %p33 = pneg %p29
      $region14: #{tpu_custom_call.1} parent=5 // pred_check_branch
        %35 = sbr.rel (%p33) target = $region16
      $region15: #{tpu_custom_call.1} parent=5 // pred_region
        %s36 = sshll.u32 1, 1
        %s37 = ssub.s32 %s36, 1
        loop: start=0, step=1, limit=1
        $region17: #{tpu_custom_call.1} parent=15 // loop_pre_header
          _
        $region18: #{tpu_custom_call.1} parent=15 // loop_header
          %s39 = sphi 0, %s43
          %p40 = scmp.ge.s32.totalorder %s39, 1
          %s44 = sphi %s26, %s26
          %s45 = sphi %s27, %s27
        $region19: #{tpu_custom_call.1} parent=15 // loop_header_branch
          %42 = sbr.rel (%p40) target = $region23
        $region20: #{tpu_custom_call.1} parent=15 // loop_body
          %v46 = vld [vmem:[%s44] sm:%s37]
          %47 = vst [vmem:[%s45] sm:%s37] %v46
        $region21: #{tpu_custom_call.1} parent=15 // loop_footer
          %s43 = sadd.s32 1, %s39
        $region22: #{tpu_custom_call.1} parent=15 // loop_footer_branch
          %38 = sbr.rel target = $region18
        $region23: #{tpu_custom_call.1} parent=15 // loop_exit
          _
      $region16: #{tpu_custom_call.1} parent=5 // pred_fallthru
        _
      // Predicated region
      $region35: #{tpu_custom_call.1} parent=5 // pred_check
        _
      $region36: #{tpu_custom_call.1} parent=5 // pred_check_branch
        %72 = sbr.rel (0) target = $region38
      $region37: #{tpu_custom_call.1} parent=5 // pred_region
        %73 = vsyncadd [#allocation4], 16
      $region38: #{tpu_custom_call.1} parent=5 // pred_fallthru
        _
    $region6: #{tpu_custom_call.1} parent=1 // loop_footer
      %s23 = sadd.s32 1, %s19
    $region7: #{tpu_custom_call.1} parent=1 // loop_footer_branch
      %18 = sbr.rel target = $region3
    $region8: #{tpu_custom_call.1} parent=1 // loop_exit
      _
    loop: start=0, step=1, limit=16
    $region39: #{tpu_custom_call.1} parent=1 // loop_pre_header
      _
    $region40: #{tpu_custom_call.1} parent=1 // loop_header
      %s75 = sphi 0, %s79
      %p76 = scmp.ge.s32.totalorder %s75, 16
    $region41: #{tpu_custom_call.1} parent=1 // loop_header_branch
      %78 = sbr.rel (%p76) target = $region45
    $region42: #{tpu_custom_call.1} parent=1 // loop_body
      %81 = dma.done [#allocation4], 16
    $region43: #{tpu_custom_call.1} parent=1 // loop_footer
      %s79 = sadd.s32 1, %s75
    $region44: #{tpu_custom_call.1} parent=1 // loop_footer_branch
      %74 = sbr.rel target = $region40
    $region45: #{tpu_custom_call.1} parent=1 // loop_exit
      _
    %v82 = vld [vmem:[#allocation2] sm:$0xff]
    %v83 = vld [vmem:[#allocation2 + $0x8] sm:$0xff]
    %vm84 = vcmask 261120
    %85 = vst.msk [vmem:[#allocation7] sm:$0xff] %vm84, %v82
    %86 = vst.msk [vmem:[#allocation7 + $0x8] sm:$0xff] %vm84, %v83
    %p87 = scmp.eq.s32.totalorder 0, 0
    // Predicated region
    $region46: #{tpu_custom_call.1} parent=1 // pred_check
      %p88 = pneg %p87
    $region47: #{tpu_custom_call.1} parent=1 // pred_check_branch
      %90 = sbr.rel (%p88) target = $region49
    $region48: #{tpu_custom_call.1} parent=1 // pred_region
      %vm91 = vcmask 254976
      %92 = vst.msk [vmem:[#allocation3] sm:$0x3] %vm91, 0.0
    $region49: #{tpu_custom_call.1} parent=1 // pred_fallthru
      _
    %v93 = vld [vmem:[#allocation2] ss:$2 sm:$0xff]
    %v94 = vld [vmem:[#allocation3] sm:$0x1]
    %v95 = vsel %vm84, %v93, 0.0
    %v96 = vrot.slane %v95, 4
    %v97 = vadd.f32 %v95, %v96
    %v98 = vrot.slane %v97, 2
    %v99 = vadd.f32 %v97, %v98
    %v100 = vrot.slane %v99, 1
    %v101 = vadd.f32 %v99, %v100
    %v102 = vadd.f32 %v94, %v101
    %vm103 = vcmask 253952
    %104 = vst.msk [vmem:[#allocation3] sm:$0x1] %vm103, %v102
    %s105 = scalar_lea.vmem [#allocation2], 1
    %v106 = vld [vmem:[%s105] ss:$2 sm:$0xff]
    %v107 = vld [vmem:[#allocation3 + $0x1] sm:$0x1]
    %v108 = vsel %vm84, %v106, 0.0
    %v109 = vrot.slane %v108, 4
    %v110 = vadd.f32 %v108, %v109
    %v111 = vrot.slane %v110, 2
    %v112 = vadd.f32 %v110, %v111
    %v113 = vrot.slane %v112, 1
    %v114 = vadd.f32 %v112, %v113
    %v115 = vadd.f32 %v107, %v114
    %116 = vst.msk [vmem:[#allocation3 + $0x1] sm:$0x1] %vm103, %v115
    // Predicated region
    $region50: #{tpu_custom_call.1} parent=1 // pred_check
      %p117 = pneg %p87
    $region51: #{tpu_custom_call.1} parent=1 // pred_check_branch
      %119 = sbr.rel (%p117) target = $region53
    $region52: #{tpu_custom_call.1} parent=1 // pred_region
      %v120 = vld [vmem:[#allocation3] sm:$0x3]
      %v121 = vmul.f32 %v120, 0.125
      %vm122 = vcmask 254976
      %123 = vst.msk [vmem:[#allocation9] sm:$0x3] %vm122, %v121
    $region53: #{tpu_custom_call.1} parent=1 // pred_fallthru
      _
    // Predicated region
    $region54: #{tpu_custom_call.1} parent=1 // pred_check
      _
    $region55: #{tpu_custom_call.1} parent=1 // pred_check_branch
      %125 = sbr.rel (0) target = $region57
    $region56: #{tpu_custom_call.1} parent=1 // pred_region
      %s127 = ssub.s32 256, 256
      %128 = vsyncadd [#allocation8], %s127
      %s129 = sshll.u32 [#allocation7], 4
      %s130 = int_to_ptr.vmem [resolvable:$true] %s129
      %135 = dma.vmem_to_hbm [thread:$0]  %s130, 256, %s2, [#allocation8], 128, 128, 8
    $region57: #{tpu_custom_call.1} parent=1 // pred_fallthru
      _
    // Predicated region
    $region58: #{tpu_custom_call.1} parent=1 // pred_check
      _
    $region59: #{tpu_custom_call.1} parent=1 // pred_check_branch
      %137 = sbr.rel (0) target = $region61
    $region60: #{tpu_custom_call.1} parent=1 // pred_region
      %s139 = ssub.s32 32, 32
      %140 = vsyncadd [#allocation10], %s139
      %s142 = sshll.u32 [#allocation9], 4
      %s143 = int_to_ptr.vmem [resolvable:$true] %s142
      %145 = dma.vmem_to_hbm [thread:$0]  %s143, 32, %s3, [#allocation10]
    $region61: #{tpu_custom_call.1} parent=1 // pred_fallthru
      _
    // Predicated region
    $region62: #{tpu_custom_call.1} parent=1 // pred_check
      _
    $region63: #{tpu_custom_call.1} parent=1 // pred_check_branch
      %147 = sbr.rel (0) target = $region65
    $region64: #{tpu_custom_call.1} parent=1 // pred_region
      %148 = dma.done [#allocation8], 256
    $region65: #{tpu_custom_call.1} parent=1 // pred_fallthru
      _
    // Predicated region
    $region66: #{tpu_custom_call.1} parent=1 // pred_check
      _
    $region67: #{tpu_custom_call.1} parent=1 // pred_check_branch
      %150 = sbr.rel (0) target = $region69
    $region68: #{tpu_custom_call.1} parent=1 // pred_region
      %151 = dma.done [#allocation10], 32
    $region69: #{tpu_custom_call.1} parent=1 // pred_fallthru
      _
    %152 = vsyncpa [#allocation8], 1
    %153 = vsyncpa [#allocation10], 1
  %154 = vsyncmov [#allocation4]
  %s155 = vpop.sfrf %154
  %p156 = scmp.eq.s32.totalorder %s155, 0
  %p157 = pneg %p156
  %159 = shalt.err (%p157)

</llo_original>
